<compile_context>
chip_gen: v6e
topology: v6e:2x2x1
jax: 0.10.0
libtpu: 0.0.40
codegen_flags: <defaults>
</compile_context>

<pallas_src>
import jax
import jax.numpy as jnp
from jax.experimental import pallas as pl
from jax.experimental.pallas import tpu as pltpu

_LANES = 128


def _pow50_kernel(x_ref, o_ref):
    # Elementwise x ** 50 via squaring chain (7 multiplies), f32 accumulation.
    x = x_ref[...].astype(jnp.float32)
    x2 = x * x            # x^2
    x4 = x2 * x2          # x^4
    x8 = x4 * x4          # x^8
    x16 = x8 * x8         # x^16
    x32 = x16 * x16       # x^32
    o_ref[...] = (x32 * x16 * x2).astype(o_ref.dtype)


def _choose_width(n_elems):
    """Largest multiple of 128 (<= 4096) that divides n_elems (assumed %128==0)."""
    m = n_elems // _LANES
    for d in range(min(32, m), 0, -1):
        if m % d == 0:
            return _LANES * d
    return _LANES


def _choose_tile_rows(rows, width, itemsize, target_block_bytes):
    # Sublane packing granularity: 8 for 32-bit, 16 for 16-bit, 32 for 8-bit.
    sub = {4: 8, 2: 16, 1: 32}.get(itemsize, 8)
    if rows <= sub:
        return rows  # full-extent block along the sublane dim is always legal
    tr = target_block_bytes // (width * itemsize)
    tr = max(sub, (tr // sub) * sub)
    tr = min(tr, (rows // sub) * sub)
    if tr >= rows and rows >= 2 * sub:
        # Ensure >=2 grid steps so the "parallel" axis can shard across the
        # two TensorCores of a v7x chip.
        tr = max(sub, ((rows // 2) // sub) * sub)
    return tr


def act_op(x, *, target_block_bytes=2 * 1024 * 1024):
    """Elementwise x ** 50, matching torch `x ** 50`."""
    orig_shape = x.shape
    dtype = x.dtype
    itemsize = jnp.dtype(dtype).itemsize
    n = x.size

    x_flat = jnp.ravel(x)

    # Only pad when the flat length is not a multiple of 128 (ragged tail
    # fallback); for typical NCHW shapes this branch is not taken, so there
    # is no extra HBM pass for pad/slice.
    if n % _LANES != 0:
        n_pad = ((n + _LANES - 1) // _LANES) * _LANES
        x_flat = jnp.concatenate(
            [x_flat, jnp.zeros((n_pad - n,), dtype=dtype)]
        )
    else:
        n_pad = n

    width = _choose_width(n_pad)
    rows = n_pad // width
    x2d = x_flat.reshape(rows, width)

    tile_rows = _choose_tile_rows(rows, width, itemsize, target_block_bytes)
    grid = (pl.cdiv(rows, tile_rows),)

    out2d = pl.pallas_call(
        _pow50_kernel,
        out_shape=jax.ShapeDtypeStruct((rows, width), dtype),
        grid=grid,
        in_specs=[pl.BlockSpec((tile_rows, width), lambda i: (i, 0))],
        out_specs=pl.BlockSpec((tile_rows, width), lambda i: (i, 0)),
        compiler_params=pltpu.CompilerParams(
            dimension_semantics=("parallel",)
        ),
    )(x2d)

    out_flat = out2d.reshape(-1)
    if n_pad != n:
        out_flat = out_flat[:n]
    return out_flat.reshape(orig_shape)


if __name__ == "__main__":
    key = jax.random.PRNGKey(0)
    # NCHW input, small shapes: batch=2, channels=4, spatial=16x16
    x = jax.random.uniform(
        key, (2, 4, 16, 16), dtype=jnp.float32, minval=-1.2, maxval=1.2
    )

    y = act_op(x)
    y = jax.block_until_ready(y)

    # Reference check against plain JAX elementwise power.
    y_ref = x ** 50
    assert y.shape == x.shape and y.dtype == x.dtype
    assert jnp.allclose(y, y_ref, rtol=1e-5, atol=1e-6), "mismatch vs reference"

    print("KERNEL_OK")
</pallas_src>

<mosaic_0001>
module attributes {stable_mosaic.version = 11 : i64} {
  func.func @_pow50_kernel(%arg0: i32, %arg1: memref<1x2048xf32, #tpu.memory_space<vmem>>, %arg2: memref<1x2048xf32, #tpu.memory_space<vmem>>) attributes {dimension_semantics = [#tpu.dimension_semantics<parallel>], iteration_bounds = array<i64: 1>, scalar_prefetch = 0 : i64, scratch_operands = 0 : i64, tpu.core_type = #tpu.core_type<tc>, window_params = [{transform_indices = @transform_0, window_bounds = array<i64: 1, 2048>}, {transform_indices = @transform_1, window_bounds = array<i64: 1, 2048>}]} {
    %c0 = arith.constant 0 : index
    %c0_0 = arith.constant 0 : index
    %0 = vector.load %arg1[%c0, %c0_0] : memref<1x2048xf32, #tpu.memory_space<vmem>>, vector<1x2048xf32>
    %1 = arith.mulf %0, %0 : vector<1x2048xf32>
    %2 = arith.mulf %1, %1 : vector<1x2048xf32>
    %3 = arith.mulf %2, %2 : vector<1x2048xf32>
    %4 = arith.mulf %3, %3 : vector<1x2048xf32>
    %5 = arith.mulf %4, %4 : vector<1x2048xf32>
    %6 = arith.mulf %5, %4 : vector<1x2048xf32>
    %7 = arith.mulf %6, %1 : vector<1x2048xf32>
    %c0_1 = arith.constant 0 : index
    %c0_2 = arith.constant 0 : index
    %8 = vector.load %arg2[%c0_1, %c0_2] : memref<1x2048xf32, #tpu.memory_space<vmem>>, vector<1x2048xf32>
    tpu.vector_store %arg2[%c0_1, %c0_2], %7 {strides = array<i32>} : memref<1x2048xf32, #tpu.memory_space<vmem>>, vector<1x2048xf32>,
    return
  }
  func.func @transform_0(%arg0: i32) -> (i32, i32) {
    %c0_i32 = arith.constant 0 : i32
    %c0_i32_0 = arith.constant 0 : i32
    return %arg0, %c0_i32 : i32, i32
  }
  func.func @transform_1(%arg0: i32) -> (i32, i32) {
    %c0_i32 = arith.constant 0 : i32
    %c0_i32_0 = arith.constant 0 : i32
    return %arg0, %c0_i32 : i32, i32
  }
}

</mosaic_0001>

<llo_original>
// kernel: tpu_custom_call.1
$region0: #{tpu_custom_call.1}
  #allocation0 [shape = 'u32[]', space=smem, size = 0x4, offset = 0x4, fixed_abs, tag = 'smem constant byte address 0x4 - core index']
  #allocation1 [shape = 'u32[144,128]{1,0:T(1,128)}', space=vmem, size = 0x12000, scoped, tag = 'internal scratch']
  %s0 = inlined_call_operand.hbm [shape: f32[1,2048], index: 0, kind: input, shape index: {}]
  %s1 = inlined_call_operand.hbm [shape: f32[1,2048], index: 1, kind: output, shape index: {}]
  %s2 = sld [smem:[#allocation0]]
  $region18: #{tpu_custom_call.1} parent=0
    _
  %s4 = ssub.s32 1, %s2
  %s5 = scalar_select 0, %s4, %s2
  $region1: #{tpu_custom_call.1} parent=0
    #allocation2 [shape = 'u8[8192]{0}', space=vmem, size = 0x2000, scoped, tag = 'input window, operand 0, single buffered']
    #allocation3 [shape = 's32[1]{0}', space=sflag, size = 0x4, scoped, tag = 'scoped memory for tpu_custom_call.1']
    #allocation4 [shape = 's32[1]{0}', space=sflag, size = 0x4, scoped, tag = 'scoped memory for tpu_custom_call.1']
    #allocation5 [shape = 'u8[8192]{0}', space=vmem, size = 0x2000, scoped, tag = 'output window, operand 0, single buffered']
    %6 = vsyncpa [#allocation3], 0
    %7 = vsyncpa [#allocation4], 0
    // Predicated region
    $region2: #{tpu_custom_call.1} parent=1 // pred_check
      _
    $region3: #{tpu_custom_call.1} parent=1 // pred_check_branch
      %9 = sbr.rel (0) target = $region5
    $region4: #{tpu_custom_call.1} parent=1 // pred_region
      %s11 = ssub.s32 256, 256
      %12 = vsyncadd [#allocation3], %s11
      %s14 = sshll.u32 [#allocation2], 4
      %s15 = int_to_ptr.vmem [resolvable:$true] %s14
      %17 = dma.hbm_to_vmem [thread:$0]  %s0, 256, %s15, [#allocation3]
    $region5: #{tpu_custom_call.1} parent=1 // pred_fallthru
      _
    // Predicated region
    $region6: #{tpu_custom_call.1} parent=1 // pred_check
      _
    $region7: #{tpu_custom_call.1} parent=1 // pred_check_branch
      %19 = sbr.rel (0) target = $region9
    $region8: #{tpu_custom_call.1} parent=1 // pred_region
      %20 = dma.done [#allocation3], 256
    $region9: #{tpu_custom_call.1} parent=1 // pred_fallthru
      _
    %v21 = vld [vmem:[#allocation2] sm:$0xff]
    %v22 = vld [vmem:[#allocation2 + $0x8] sm:$0xff]
    %v23 = vmul.f32 %v21, %v21
    %v24 = vmul.f32 %v22, %v22
    %v25 = vmul.f32 %v23, %v23
    %v26 = vmul.f32 %v24, %v24
    %v27 = vmul.f32 %v25, %v25
    %v28 = vmul.f32 %v26, %v26
    %v29 = vmul.f32 %v27, %v27
    %v30 = vmul.f32 %v28, %v28
    %v31 = vmul.f32 %v29, %v29
    %v32 = vmul.f32 %v30, %v30
    %v33 = vmul.f32 %v31, %v29
    %v34 = vmul.f32 %v32, %v30
    %v35 = vmul.f32 %v33, %v23
    %v36 = vmul.f32 %v34, %v24
    %37 = vst [vmem:[#allocation5] sm:$0xff] %v35
    %38 = vst [vmem:[#allocation5 + $0x8] sm:$0xff] %v36
    // Predicated region
    $region10: #{tpu_custom_call.1} parent=1 // pred_check
      _
    $region11: #{tpu_custom_call.1} parent=1 // pred_check_branch
      %40 = sbr.rel (0) target = $region13
    $region12: #{tpu_custom_call.1} parent=1 // pred_region
      %s42 = ssub.s32 256, 256
      %43 = vsyncadd [#allocation4], %s42
      %s45 = sshll.u32 [#allocation5], 4
      %s46 = int_to_ptr.vmem [resolvable:$true] %s45
      %48 = dma.vmem_to_hbm [thread:$0]  %s46, 256, %s1, [#allocation4]
    $region13: #{tpu_custom_call.1} parent=1 // pred_fallthru
      _
    // Predicated region
    $region14: #{tpu_custom_call.1} parent=1 // pred_check
      _
    $region15: #{tpu_custom_call.1} parent=1 // pred_check_branch
      %50 = sbr.rel (0) target = $region17
    $region16: #{tpu_custom_call.1} parent=1 // pred_region
      %51 = dma.done [#allocation4], 256
    $region17: #{tpu_custom_call.1} parent=1 // pred_fallthru
      _
    %52 = vsyncpa [#allocation3], 1
    %53 = vsyncpa [#allocation4], 1

</llo_original>
